<compile_context>
chip_gen: v7x
topology: tpu7x:2x2x1
jax: 0.10.0
libtpu: 0.0.40
codegen_flags: <defaults>
</compile_context>

<pallas_src>
import jax
import jax.numpy as jnp
from jax.experimental import pallas as pl
from jax.experimental.pallas import tpu as pltpu

TIME_EMBED_DIM = 16
SPACE_EMBED_DIM = 16
N_LAYERS = 4
HIDDEN = TIME_EMBED_DIM + SPACE_EMBED_DIM   # 32
HALF = TIME_EMBED_DIM // 2                  # 8  (Fourier features)


def _round_up(n, m):
    return ((n + m - 1) // m) * m


def _silu(x):
    return x * jax.nn.sigmoid(x)


# -----------------------------------------------------------------------------
# Kernel (transposed layout: features on sublanes, batch on lanes)
# -----------------------------------------------------------------------------
def tinynet_kernel(xt_ref, w_ref, v_ref, o_ref):
    """
    xt_ref : (1 + d, TB)  row 0 = t, rows 1:1+d = x^T          (batch tile)
    w_ref  : (N_LAYERS + 2, HIDDEN, HIDDEN)  packed weights (out, in layout)
             [0]      block-diag fused input projection (sin|cos|t|x -> 32)
             [1..4]   hidden layers
             [5]      output layer (rows 0:d used)
    v_ref  : (HIDDEN, 8) packed column vectors:
             col 0 = Fourier W (rows 0:8), col 1 = fused input bias,
             cols 2..5 = hidden biases, col 6 = output bias (rows 0:d)
    o_ref  : (d, TB)
    """
    d_out = o_ref.shape[0]
    xt = xt_ref[...]                                  # (1 + d, TB)
    v = v_ref[...]                                    # (HIDDEN, 8)
    nin = xt.shape[0]                                 # 1 + d

    # --- Gaussian Fourier projection of t (row 0 of xt) ---
    t_row = xt[0:1, :]                                # (1, TB)
    wf_col = v[0:HALF, 0:1]                           # (8, 1)
    x_proj = wf_col * t_row * (2.0 * jnp.pi)          # (8, TB)
    s = jnp.sin(x_proj)
    c = jnp.cos(x_proj)

    # --- fused (block-diagonal) input projection: no concats, one logical
    #     matmul accumulated from three partial products ---
    w0 = w_ref[0]                                     # (32, 32)
    z = (jnp.dot(w0[:, 0:HALF], s, preferred_element_type=jnp.float32)
         + jnp.dot(w0[:, HALF:TIME_EMBED_DIM], c, preferred_element_type=jnp.float32)
         + jnp.dot(w0[:, TIME_EMBED_DIM:TIME_EMBED_DIM + nin], xt,
                   preferred_element_type=jnp.float32)
         + v[:, 1:2])
    h = _silu(z)                                      # (32, TB)  rows: [hx ; ht]

    # --- 4 hidden layers (statically unrolled) ---
    for l in range(N_LAYERS):
        z = jnp.dot(w_ref[1 + l], h, preferred_element_type=jnp.float32) \
            + v[:, 2 + l:3 + l]
        h = _silu(z)

    # --- output projection ---
    out = jnp.dot(w_ref[N_LAYERS + 1][0:d_out, :], h,
                  preferred_element_type=jnp.float32) \
        + v[0:d_out, 2 + N_LAYERS:3 + N_LAYERS]
    o_ref[...] = out.astype(o_ref.dtype)


# -----------------------------------------------------------------------------
# Host-side parameter packing (done ONCE)
# -----------------------------------------------------------------------------
def pack_params(params, d):
    """Pack math-layout params into the 2 kernel operands (kernel uses (out,in))."""
    assert TIME_EMBED_DIM + 1 + d <= HIDDEN, "d too large for fused packing"
    wt, win = params["wt"], params["win"]

    w_stack = jnp.zeros((N_LAYERS + 2, HIDDEN, HIDDEN), jnp.float32)

    # Block-diagonal fused input weight: columns [sin(8) | cos(8) | t(1) | x(d)]
    w0 = jnp.zeros((HIDDEN, HIDDEN), jnp.float32)
    w0 = w0.at[SPACE_EMBED_DIM:, 0:HALF].set(wt[0:HALF, :].T)               # sin -> ht
    w0 = w0.at[SPACE_EMBED_DIM:, HALF:TIME_EMBED_DIM].set(wt[HALF:, :].T)   # cos -> ht
    w0 = w0.at[0:SPACE_EMBED_DIM,
               TIME_EMBED_DIM + 1:TIME_EMBED_DIM + 1 + d].set(win.T)        # x   -> hx
    w_stack = w_stack.at[0].set(w0)

    for l in range(N_LAYERS):
        w_stack = w_stack.at[1 + l].set(params["wh"][l].T)
    w_stack = w_stack.at[N_LAYERS + 1, 0:d, :].set(params["wout"].T)

    v = jnp.zeros((HIDDEN, 8), jnp.float32)
    v = v.at[0:HALF, 0].set(params["wf"][0])                 # Fourier weights
    v = v.at[0:SPACE_EMBED_DIM, 1].set(params["bin"][0])     # fused bias (space)
    v = v.at[SPACE_EMBED_DIM:, 1].set(params["bt"][0])       # fused bias (time)
    for l in range(N_LAYERS):
        v = v.at[:, 2 + l].set(params["bh"][l])
    v = v.at[0:d, 2 + N_LAYERS].set(params["bout"][0])       # output bias
    return w_stack, v


# -----------------------------------------------------------------------------
# Wrapper: layout plumbing + pallas_call with a batch grid
# -----------------------------------------------------------------------------
def tinynet_forward(x, t, w_stack, v_pack, *, tb_max=2048):
    B, d = x.shape
    tb = min(tb_max, _round_up(B, 128))        # lane-dense batch tile
    Bp = _round_up(B, tb)

    # (1 + d, B): row 0 = t, rows 1.. = x^T ; pad batch (lanes) to tile multiple.
    xt = jnp.concatenate(
        [t.reshape(1, B).astype(jnp.float32), x.astype(jnp.float32).T], axis=0)
    if Bp != B:
        xt = jnp.pad(xt, ((0, 0), (0, Bp - B)))

    grid = (Bp // tb,)
    out_t = pl.pallas_call(
        tinynet_kernel,
        out_shape=jax.ShapeDtypeStruct((d, Bp), jnp.float32),
        grid_spec=pltpu.PrefetchScalarGridSpec(
            num_scalar_prefetch=0,
            grid=grid,
            in_specs=[
                pl.BlockSpec((1 + d, tb), lambda i: (0, i)),              # batch tile
                pl.BlockSpec((N_LAYERS + 2, HIDDEN, HIDDEN),
                             lambda i: (0, 0, 0)),                        # resident
                pl.BlockSpec((HIDDEN, 8), lambda i: (0, 0)),              # resident
            ],
            out_specs=pl.BlockSpec((d, tb), lambda i: (0, i)),
        ),
        compiler_params=pltpu.CompilerParams(
            dimension_semantics=("parallel",),
            vmem_limit_bytes=32 * 1024 * 1024,
        ),
    )(xt, w_stack, v_pack)

    return out_t[:, :B].T                       # back to (B, d)


# -----------------------------------------------------------------------------
# Math-layout parameter init (mirrors the PyTorch module) + pure-JAX reference
# -----------------------------------------------------------------------------
def init_params(key, d):
    ks = jax.random.split(key, 16)

    def lin(kw, kb, fan_in, fan_out):
        bound = 1.0 / jnp.sqrt(fan_in)
        w = jax.random.uniform(kw, (fan_in, fan_out), jnp.float32, -bound, bound)
        b = jax.random.uniform(kb, (1, fan_out), jnp.float32, -bound, bound)
        return w, b

    params = {}
    params["wf"] = (jax.random.normal(ks[0], (1, HALF), jnp.float32) * 30.0)
    params["wt"], params["bt"] = lin(ks[1], ks[2], TIME_EMBED_DIM, TIME_EMBED_DIM)
    params["win"], params["bin"] = lin(ks[3], ks[4], d, SPACE_EMBED_DIM)

    whs, bhs = [], []
    for l in range(N_LAYERS):
        w, b = lin(ks[5 + 2 * l], ks[6 + 2 * l], HIDDEN, HIDDEN)
        whs.append(w)
        bhs.append(b[0])
    params["wh"] = jnp.stack(whs)
    params["bh"] = jnp.stack(bhs)

    params["wout"], params["bout"] = lin(ks[13], ks[14], HIDDEN, d)
    return params


def tinynet_ref(x, t, params):
    x_proj = t[:, None] * params["wf"][0][None, :] * 2.0 * jnp.pi
    emb = jnp.concatenate([jnp.sin(x_proj), jnp.cos(x_proj)], axis=-1)
    ht = jax.nn.silu(emb @ params["wt"] + params["bt"])
    hx = jax.nn.silu(x @ params["win"] + params["bin"])
    h = jnp.concatenate([hx, ht], axis=-1)
    for l in range(N_LAYERS):
        h = jax.nn.silu(h @ params["wh"][l] + params["bh"][l][None, :])
    return h @ params["wout"] + params["bout"]


if __name__ == "__main__":
    d = 4
    B = 8
    key = jax.random.PRNGKey(0)
    k_params, k_x, k_t = jax.random.split(key, 3)

    params = init_params(k_params, d)
    x = jax.random.normal(k_x, (B, d), jnp.float32)
    t = jax.random.uniform(k_t, (B,), jnp.float32)

    w_stack, v_pack = pack_params(params, d)      # host-side, once

    out = tinynet_forward(x, t, w_stack, v_pack)
    out = jax.block_until_ready(out)

    ref = tinynet_ref(x, t, params)
    assert out.shape == (B, d)
    assert jnp.allclose(out, ref, atol=3e-5, rtol=1e-5), (out, ref)

    print("KERNEL_OK")
</pallas_src>

<mosaic_0001>
module attributes {stable_mosaic.version = 11 : i64} {
  func.func @tinynet_kernel(%arg0: i32, %arg1: memref<5x128xf32, #tpu.memory_space<vmem>>, %arg2: memref<6x32x32xf32, #tpu.memory_space<vmem>>, %arg3: memref<32x8xf32, #tpu.memory_space<vmem>>, %arg4: memref<4x128xf32, #tpu.memory_space<vmem>>) attributes {dimension_semantics = [#tpu.dimension_semantics<parallel>], iteration_bounds = array<i64: 1>, scalar_prefetch = 0 : i64, scratch_operands = 0 : i64, tpu.core_type = #tpu.core_type<tc>, window_params = [{transform_indices = @transform_0, window_bounds = array<i64: 5, 128>}, {pipeline_mode = #tpu.pipeline_mode<synchronous>, transform_indices = @transform_1, window_bounds = array<i64: 6, 32, 32>}, {pipeline_mode = #tpu.pipeline_mode<synchronous>, transform_indices = @transform_2, window_bounds = array<i64: 32, 8>}, {transform_indices = @transform_3, window_bounds = array<i64: 4, 128>}]} {
    %c0 = arith.constant 0 : index
    %c0_0 = arith.constant 0 : index
    %0 = vector.load %arg1[%c0, %c0_0] : memref<5x128xf32, #tpu.memory_space<vmem>>, vector<5x128xf32>
    %c0_1 = arith.constant 0 : index
    %c0_2 = arith.constant 0 : index
    %1 = vector.load %arg3[%c0_1, %c0_2] : memref<32x8xf32, #tpu.memory_space<vmem>>, vector<32x8xf32>
    %2 = vector.extract_strided_slice %0 {offsets = [0, 0], sizes = [1, 128], strides = [1, 1]} : vector<5x128xf32> to vector<1x128xf32>
    %3 = vector.extract_strided_slice %1 {offsets = [0, 0], sizes = [8, 1], strides = [1, 1]} : vector<32x8xf32> to vector<8x1xf32>
    %4 = vector.broadcast %3 : vector<8x1xf32> to vector<8x128xf32>
    %5 = vector.broadcast %2 : vector<1x128xf32> to vector<8x128xf32>
    %6 = arith.mulf %4, %5 : vector<8x128xf32>
    %cst = arith.constant 6.28318548 : f32
    %7 = vector.broadcast %cst : f32 to vector<8x128xf32>
    %8 = arith.mulf %6, %7 : vector<8x128xf32>
    %9 = math.sin %8 : vector<8x128xf32>
    %10 = math.cos %8 : vector<8x128xf32>
    %c0_3 = arith.constant 0 : index
    %c0_4 = arith.constant 0 : index
    %c0_5 = arith.constant 0 : index
    %11 = vector.load %arg2[%c0_3, %c0_4, %c0_5] : memref<6x32x32xf32, #tpu.memory_space<vmem>>, vector<1x32x32xf32>
    %12 = vector.shape_cast %11 : vector<1x32x32xf32> to vector<32x32xf32>
    %13 = vector.extract_strided_slice %12 {offsets = [0, 0], sizes = [32, 8], strides = [1, 1]} : vector<32x32xf32> to vector<32x8xf32>
    %cst_6 = arith.constant dense<0.000000e+00> : vector<32x128xf32>
    %14 = tpu.matmul %13, %9, %cst_6 {dimension_numbers = #tpu.dot_dimension_numbers<[1], [0], [0], [1], [0, 0, 1, 1], [], []>} : vector<32x8xf32>, vector<8x128xf32>, vector<32x128xf32> -> vector<32x128xf32>
    %15 = vector.extract_strided_slice %12 {offsets = [0, 8], sizes = [32, 8], strides = [1, 1]} : vector<32x32xf32> to vector<32x8xf32>
    %cst_7 = arith.constant dense<0.000000e+00> : vector<32x128xf32>
    %16 = tpu.matmul %15, %10, %cst_7 {dimension_numbers = #tpu.dot_dimension_numbers<[1], [0], [0], [1], [0, 0, 1, 1], [], []>} : vector<32x8xf32>, vector<8x128xf32>, vector<32x128xf32> -> vector<32x128xf32>
    %17 = arith.addf %14, %16 : vector<32x128xf32>
    %18 = vector.extract_strided_slice %12 {offsets = [0, 16], sizes = [32, 5], strides = [1, 1]} : vector<32x32xf32> to vector<32x5xf32>
    %cst_8 = arith.constant dense<0.000000e+00> : vector<32x128xf32>
    %19 = tpu.matmul %18, %0, %cst_8 {dimension_numbers = #tpu.dot_dimension_numbers<[1], [0], [0], [1], [0, 0, 1, 1], [], []>} : vector<32x5xf32>, vector<5x128xf32>, vector<32x128xf32> -> vector<32x128xf32>
    %20 = arith.addf %17, %19 : vector<32x128xf32>
    %21 = vector.extract_strided_slice %1 {offsets = [0, 1], sizes = [32, 1], strides = [1, 1]} : vector<32x8xf32> to vector<32x1xf32>
    %22 = vector.broadcast %21 : vector<32x1xf32> to vector<32x128xf32>
    %23 = arith.addf %20, %22 : vector<32x128xf32>
    %24 = arith.negf %23 : vector<32x128xf32>
    %25 = math.exp %24 : vector<32x128xf32>
    %cst_9 = arith.constant 1.000000e+00 : f32
    %26 = vector.broadcast %cst_9 : f32 to vector<32x128xf32>
    %27 = arith.addf %26, %25 : vector<32x128xf32>
    %28 = arith.divf %26, %27 : vector<32x128xf32>
    %29 = arith.mulf %23, %28 : vector<32x128xf32>
    %c1 = arith.constant 1 : index
    %c0_10 = arith.constant 0 : index
    %c0_11 = arith.constant 0 : index
    %30 = vector.load %arg2[%c1, %c0_10, %c0_11] : memref<6x32x32xf32, #tpu.memory_space<vmem>>, vector<1x32x32xf32>
    %31 = vector.shape_cast %30 : vector<1x32x32xf32> to vector<32x32xf32>
    %cst_12 = arith.constant dense<0.000000e+00> : vector<32x128xf32>
    %32 = tpu.matmul %31, %29, %cst_12 {dimension_numbers = #tpu.dot_dimension_numbers<[1], [0], [0], [1], [0, 0, 1, 1], [], []>} : vector<32x32xf32>, vector<32x128xf32>, vector<32x128xf32> -> vector<32x128xf32>
    %33 = vector.extract_strided_slice %1 {offsets = [0, 2], sizes = [32, 1], strides = [1, 1]} : vector<32x8xf32> to vector<32x1xf32>
    %34 = vector.broadcast %33 : vector<32x1xf32> to vector<32x128xf32>
    %35 = arith.addf %32, %34 : vector<32x128xf32>
    %36 = arith.negf %35 : vector<32x128xf32>
    %37 = math.exp %36 : vector<32x128xf32>
    %cst_13 = arith.constant 1.000000e+00 : f32
    %38 = vector.broadcast %cst_13 : f32 to vector<32x128xf32>
    %39 = arith.addf %38, %37 : vector<32x128xf32>
    %40 = arith.divf %38, %39 : vector<32x128xf32>
    %41 = arith.mulf %35, %40 : vector<32x128xf32>
    %c2 = arith.constant 2 : index
    %c0_14 = arith.constant 0 : index
    %c0_15 = arith.constant 0 : index
    %42 = vector.load %arg2[%c2, %c0_14, %c0_15] : memref<6x32x32xf32, #tpu.memory_space<vmem>>, vector<1x32x32xf32>
    %43 = vector.shape_cast %42 : vector<1x32x32xf32> to vector<32x32xf32>
    %cst_16 = arith.constant dense<0.000000e+00> : vector<32x128xf32>
    %44 = tpu.matmul %43, %41, %cst_16 {dimension_numbers = #tpu.dot_dimension_numbers<[1], [0], [0], [1], [0, 0, 1, 1], [], []>} : vector<32x32xf32>, vector<32x128xf32>, vector<32x128xf32> -> vector<32x128xf32>
    %45 = vector.extract_strided_slice %1 {offsets = [0, 3], sizes = [32, 1], strides = [1, 1]} : vector<32x8xf32> to vector<32x1xf32>
    %46 = vector.broadcast %45 : vector<32x1xf32> to vector<32x128xf32>
    %47 = arith.addf %44, %46 : vector<32x128xf32>
    %48 = arith.negf %47 : vector<32x128xf32>
    %49 = math.exp %48 : vector<32x128xf32>
    %cst_17 = arith.constant 1.000000e+00 : f32
    %50 = vector.broadcast %cst_17 : f32 to vector<32x128xf32>
    %51 = arith.addf %50, %49 : vector<32x128xf32>
    %52 = arith.divf %50, %51 : vector<32x128xf32>
    %53 = arith.mulf %47, %52 : vector<32x128xf32>
    %c3 = arith.constant 3 : index
    %c0_18 = arith.constant 0 : index
    %c0_19 = arith.constant 0 : index
    %54 = vector.load %arg2[%c3, %c0_18, %c0_19] : memref<6x32x32xf32, #tpu.memory_space<vmem>>, vector<1x32x32xf32>
    %55 = vector.shape_cast %54 : vector<1x32x32xf32> to vector<32x32xf32>
    %cst_20 = arith.constant dense<0.000000e+00> : vector<32x128xf32>
    %56 = tpu.matmul %55, %53, %cst_20 {dimension_numbers = #tpu.dot_dimension_numbers<[1], [0], [0], [1], [0, 0, 1, 1], [], []>} : vector<32x32xf32>, vector<32x128xf32>, vector<32x128xf32> -> vector<32x128xf32>
    %57 = vector.extract_strided_slice %1 {offsets = [0, 4], sizes = [32, 1], strides = [1, 1]} : vector<32x8xf32> to vector<32x1xf32>
    %58 = vector.broadcast %57 : vector<32x1xf32> to vector<32x128xf32>
    %59 = arith.addf %56, %58 : vector<32x128xf32>
    %60 = arith.negf %59 : vector<32x128xf32>
    %61 = math.exp %60 : vector<32x128xf32>
    %cst_21 = arith.constant 1.000000e+00 : f32
    %62 = vector.broadcast %cst_21 : f32 to vector<32x128xf32>
    %63 = arith.addf %62, %61 : vector<32x128xf32>
    %64 = arith.divf %62, %63 : vector<32x128xf32>
    %65 = arith.mulf %59, %64 : vector<32x128xf32>
    %c4 = arith.constant 4 : index
    %c0_22 = arith.constant 0 : index
    %c0_23 = arith.constant 0 : index
    %66 = vector.load %arg2[%c4, %c0_22, %c0_23] : memref<6x32x32xf32, #tpu.memory_space<vmem>>, vector<1x32x32xf32>
    %67 = vector.shape_cast %66 : vector<1x32x32xf32> to vector<32x32xf32>
    %cst_24 = arith.constant dense<0.000000e+00> : vector<32x128xf32>
    %68 = tpu.matmul %67, %65, %cst_24 {dimension_numbers = #tpu.dot_dimension_numbers<[1], [0], [0], [1], [0, 0, 1, 1], [], []>} : vector<32x32xf32>, vector<32x128xf32>, vector<32x128xf32> -> vector<32x128xf32>
    %69 = vector.extract_strided_slice %1 {offsets = [0, 5], sizes = [32, 1], strides = [1, 1]} : vector<32x8xf32> to vector<32x1xf32>
    %70 = vector.broadcast %69 : vector<32x1xf32> to vector<32x128xf32>
    %71 = arith.addf %68, %70 : vector<32x128xf32>
    %72 = arith.negf %71 : vector<32x128xf32>
    %73 = math.exp %72 : vector<32x128xf32>
    %cst_25 = arith.constant 1.000000e+00 : f32
    %74 = vector.broadcast %cst_25 : f32 to vector<32x128xf32>
    %75 = arith.addf %74, %73 : vector<32x128xf32>
    %76 = arith.divf %74, %75 : vector<32x128xf32>
    %77 = arith.mulf %71, %76 : vector<32x128xf32>
    %c5 = arith.constant 5 : index
    %c0_26 = arith.constant 0 : index
    %c0_27 = arith.constant 0 : index
    %78 = vector.load %arg2[%c5, %c0_26, %c0_27] : memref<6x32x32xf32, #tpu.memory_space<vmem>>, vector<1x32x32xf32>
    %79 = vector.shape_cast %78 : vector<1x32x32xf32> to vector<32x32xf32>
    %80 = vector.extract_strided_slice %79 {offsets = [0, 0], sizes = [4, 32], strides = [1, 1]} : vector<32x32xf32> to vector<4x32xf32>
    %cst_28 = arith.constant dense<0.000000e+00> : vector<4x128xf32>
    %81 = tpu.matmul %80, %77, %cst_28 {dimension_numbers = #tpu.dot_dimension_numbers<[1], [0], [0], [1], [0, 0, 1, 1], [], []>} : vector<4x32xf32>, vector<32x128xf32>, vector<4x128xf32> -> vector<4x128xf32>
    %82 = vector.extract_strided_slice %1 {offsets = [0, 6], sizes = [4, 1], strides = [1, 1]} : vector<32x8xf32> to vector<4x1xf32>
    %83 = vector.broadcast %82 : vector<4x1xf32> to vector<4x128xf32>
    %84 = arith.addf %81, %83 : vector<4x128xf32>
    %c0_29 = arith.constant 0 : index
    %c0_30 = arith.constant 0 : index
    %85 = vector.load %arg4[%c0_29, %c0_30] : memref<4x128xf32, #tpu.memory_space<vmem>>, vector<4x128xf32>
    tpu.vector_store %arg4[%c0_29, %c0_30], %84 {strides = array<i32>} : memref<4x128xf32, #tpu.memory_space<vmem>>, vector<4x128xf32>,
    return
  }
  func.func @transform_0(%arg0: i32) -> (i32, i32) {
    %c0_i32 = arith.constant 0 : i32
    %c0_i32_0 = arith.constant 0 : i32
    return %c0_i32, %arg0 : i32, i32
  }
  func.func @transform_1(%arg0: i32) -> (i32, i32, i32) {
    %c0_i32 = arith.constant 0 : i32
    %c0_i32_0 = arith.constant 0 : i32
    %c0_i32_1 = arith.constant 0 : i32
    %c0_i32_2 = arith.constant 0 : i32
    return %c0_i32, %c0_i32_0, %c0_i32_1 : i32, i32, i32
  }
  func.func @transform_2(%arg0: i32) -> (i32, i32) {
    %c0_i32 = arith.constant 0 : i32
    %c0_i32_0 = arith.constant 0 : i32
    %c0_i32_1 = arith.constant 0 : i32
    return %c0_i32, %c0_i32_0 : i32, i32
  }
  func.func @transform_3(%arg0: i32) -> (i32, i32) {
    %c0_i32 = arith.constant 0 : i32
    %c0_i32_0 = arith.constant 0 : i32
    return %c0_i32, %arg0 : i32, i32
  }
}

</mosaic_0001>

<llo_original>
// kernel: tpu_custom_call.1
$region0: #{tpu_custom_call.1}
  #allocation0 [shape = 'u32[]', space=smem, size = 0x4, offset = 0x4, fixed_abs, tag = 'smem constant byte address 0x4 - core index']
  #allocation1 [shape = 'u32[144,128]{1,0:T(1,128)}', space=vmem, size = 0x12000, scoped, tag = 'internal scratch']
  %s0 = inlined_call_operand.vmem [shape: f32[5,128], index: 0, kind: input, shape index: {}]
  %s1 = inlined_call_operand.hbm [shape: f32[6,32,32], index: 1, kind: input, shape index: {}]
  %s2 = inlined_call_operand.vmem [shape: f32[32,8], index: 2, kind: input, shape index: {}]
  %s3 = inlined_call_operand.hbm [shape: f32[4,128], index: 3, kind: output, shape index: {}]
  %s4 = sld [smem:[#allocation0]]
  $region26: #{tpu_custom_call.1} parent=0
    _
  %s6 = ssub.s32 1, %s4
  %s7 = scalar_select 0, %s6, %s4
  $region1: #{tpu_custom_call.1} parent=0
    #allocation2 [shape = 'u8[98304]{0}', space=vmem, size = 0x18000, scoped, tag = 'input window, operand 1, single buffered']
    #allocation3 [shape = 's32[1]{0}', space=sflag, size = 0x4, scoped, tag = 'scoped memory for tpu_custom_call.1']
    #allocation4 [shape = 's32[1]{0}', space=sflag, size = 0x4, scoped, tag = 'scoped memory for tpu_custom_call.1']
    #allocation5 [shape = 'u8[2048]{0}', space=vmem, size = 0x800, scoped, tag = 'output window, operand 0, single buffered']
    %8 = vsyncpa [#allocation3], 0
    %9 = vsyncpa [#allocation4], 0
    // Predicated region
    $region2: #{tpu_custom_call.1} parent=1 // pred_check
      _
    $region3: #{tpu_custom_call.1} parent=1 // pred_check_branch
      %11 = sbr.rel (0) target = $region5
    $region4: #{tpu_custom_call.1} parent=1 // pred_region
      _
    $region5: #{tpu_custom_call.1} parent=1 // pred_fallthru
      _
    // Predicated region
    $region6: #{tpu_custom_call.1} parent=1 // pred_check
      _
    $region7: #{tpu_custom_call.1} parent=1 // pred_check_branch
      %13 = sbr.rel (0) target = $region9
    $region8: #{tpu_custom_call.1} parent=1 // pred_region
      %s15 = ssub.s32 3072, 3072
      %16 = vsyncadd [#allocation3], %s15
      %s17 = sshll.u32 [#allocation2], 4
      %s18 = int_to_ptr.vmem [resolvable:$true] %s17
      %23 = dma.hbm_to_vmem [thread:$0]  %s1, 3072, %s18, [#allocation3], 128, 128, 8
    $region9: #{tpu_custom_call.1} parent=1 // pred_fallthru
      _
    // Predicated region
    $region10: #{tpu_custom_call.1} parent=1 // pred_check
      _
    $region11: #{tpu_custom_call.1} parent=1 // pred_check_branch
      %25 = sbr.rel (0) target = $region13
    $region12: #{tpu_custom_call.1} parent=1 // pred_region
      _
    $region13: #{tpu_custom_call.1} parent=1 // pred_fallthru
      _
    // Predicated region
    $region14: #{tpu_custom_call.1} parent=1 // pred_check
      _
    $region15: #{tpu_custom_call.1} parent=1 // pred_check_branch
      %27 = sbr.rel (0) target = $region17
    $region16: #{tpu_custom_call.1} parent=1 // pred_region
      %28 = dma.done [#allocation3], 3072
    $region17: #{tpu_custom_call.1} parent=1 // pred_fallthru
      _
    %v29 = vld [vmem:[%s0] sm:$0x1f]
    %v30 = vld [vmem:[%s2] sm:$0xff]
    %v31 = vld [vmem:[%s2 + $0x8] sm:$0xff]
    %v32 = vld [vmem:[%s2 + $0x10] sm:$0xff]
    %v33 = vld [vmem:[%s2 + $0x18] sm:$0xff]
    %35 = vset.pattern.permute.xlu0 0
    %36 = vperm.xlu0 %35, %v30
    %v37 = vpop.permute.xlu0 %36
    %v39 = vlaneseq
    %v40 = vshrl.u32 %v39, 7
    %v41 = vsub.s32 0, %v40
    %v42 = vrot.slane %v29, %v41
    %v43 = vmul.f32 %v37, %v42
    %v44 = vmul.f32 %v43, 6.2831855
    %v45 = vand.u32 2147483647, %v44
    %vm46 = vcmp.le.f32.partialorder %v45, 0.7853982
    %vm47 = vcmp.lt.s32.totalorder %v44, 0
    %v48 = vand.u32 %v44, 2139095040
    %v49 = vshrl.u32 %v48, 23
    %v50 = vsub.s32 %v49, 127
    %v51 = vand.u32 2147483647, %v44
    %v52 = vand.u32 %v51, 8388607
    %v53 = vor.u32 %v52, 8388608
    %v54 = vsub.s32 0, %v53
    %v55 = vadd.s32 %v50, 1
    %vm56 = vcmp.gt.s32.totalorder %v55, 0
    %v57 = vsel %vm56, %v55, 0
    %v58 = vshrl.u32 %v57, 5
    %v59 = vand.u32 %v57, 31
    %v60 = vsub.s32 32, %v59
    %v61 = vshrl.u32 683565275, %v60
    %v62 = vshll.u32 683565275, %v59
    %v63 = vshrl.u32 2475754826, %v60
    %v64 = vor.u32 %v62, %v63
    %v65 = vshll.u32 2475754826, %v59
    %v66 = vshrl.u32 2131351028, %v60
    %v67 = vor.u32 %v65, %v66
    %v68 = vshll.u32 2131351028, %v59
    %v69 = vshrl.u32 2102212464, %v60
    %v70 = vor.u32 %v68, %v69
    %v71 = vshll.u32 2102212464, %v59
    %v72 = vshrl.u32 920167782, %v60
    %v73 = vor.u32 %v71, %v72
    %v74 = vshll.u32 920167782, %v59
    %v75 = vshrl.u32 1326507024, %v60
    %v76 = vor.u32 %v74, %v75
    %vm77 = vcmp.lt.s32.totalorder %v58, 1
    %vm78 = vcmp.lt.s32.totalorder %v58, 2
    %vm79 = vcmp.lt.s32.totalorder %v58, 3
    %vm80 = vcmp.lt.s32.totalorder %v58, 4
    %v81 = vsel %vm77, %v61, %v64
    %v82 = vsel %vm80, %v70, 2102212464
    %v83 = vsel %vm79, %v67, %v82
    %v84 = vsel %vm78, %v81, %v83
    %v85 = vsel %vm77, %v64, %v67
    %v86 = vsel %vm80, %v73, 920167782
    %v87 = vsel %vm79, %v70, %v86
    %v88 = vsel %vm78, %v85, %v87
    %v89 = vsel %vm77, %v67, %v70
    %v90 = vsel %vm80, %v76, 1326507024
    %v91 = vsel %vm79, %v73, %v90
    %v92 = vsel %vm78, %v89, %v91
    %v93 = vshll.u32 %v53, 8
    %v94 = vmul.u32.u64.compose %v93, %v92
    %v95 = vextract.low.u32 %v94
    %v96 = vextract.high.u32 %v94
    %v97 = vmul.u32.u64.compose %v93, %v88
    %v98 = vextract.low.u32 %v97
    %v99 = vextract.high.u32 %v97
    %v100 = vmul.u32 %v93, %v84
    %v101 = vadd.s32 %v96, %v98
    %vm102 = vc.u32 %v96, %v98
    %v103 = vadd.s32 %v99, 1
    %v104 = vsel %vm102, %v103, %v99
    %v105 = vadd.s32 %v100, %v104
    %v106 = vadd.s32 %v105, 536870912
    %v107 = vshrl.u32 %v106, 30
    %v108 = vshll.u32 %v107, 30
    %v109 = vsub.s32 %v105, %v108
    %vm110 = vcmp.lt.s32.totalorder %v109, 0
    %v111 = vsub.s32 0, %v109
    %v112 = vsel %vm110, %v111, %v109
    %v113 = vclz %v112
    %v114 = vsub.s32 %v113, 2
    %vm115 = vcmp.gt.s32.totalorder 0, %v114
    %v116 = vsel %vm115, 0, %v114
    %v117 = vsub.s32 32, %v116
    %v118 = vshll.u32 %v109, %v116
    %v119 = vshrl.u32 %v101, %v117
    %v120 = vor.u32 %v118, %v119
    %v121 = vsub.s32 4294967266, %v116
    %v122 = vadd.s32 %v121, 127
    %v123 = vshll.u32 %v122, 23
    %v124 = vor.u32 4788187, %v123
    %v125 = vand.u32 2147483647, %v124
    %v127 = vcvt.s32.f32 %v120
    %v128 = vmul.f32 %v127, %v125
    %v129 = vxor.u32 %v128, 2147483648
    %v130 = vsel %vm47, %v129, %v128
    %v131 = vsub.s32 4, %v107
    %v132 = vsel %vm47, %v131, %v107
    %v133 = vsel %vm46, %v44, %v130
    %v134 = vsel %vm46, 0, %v132
    %v135 = vcosq.f32.pop %v133
    %v136 = vsinq.f32.pop %v133
    %vm137 = vweird.f32 %v44
    %v138 = vadd.s32 %v134, 3
    %v139 = vand.u32 %v138, 3
    %vm140 = vcmp.lt.s32.totalorder %v139, 2
    %vm141 = vcmp.eq.s32.totalorder %v139, 0
    %v142 = vxor.u32 %v136, 2147483648
    %v143 = vsel %vm141, %v135, %v142
    %vm144 = vcmp.eq.s32.totalorder %v139, 2
    %v145 = vxor.u32 %v135, 2147483648
    %v146 = vsel %vm144, %v145, %v136
    %v147 = vsel %vm140, %v143, %v146
    %v148 = vsel %vm137, nan, %v147
    %v149 = vand.u32 2147483647, %v44
    %vm150 = vcmp.le.f32.partialorder %v149, 0.7853982
    %vm151 = vcmp.lt.s32.totalorder %v44, 0
    %v152 = vand.u32 %v44, 2139095040
    %v153 = vshrl.u32 %v152, 23
    %v154 = vsub.s32 %v153, 127
    %v155 = vand.u32 2147483647, %v44
    %v156 = vand.u32 %v155, 8388607
    %v157 = vor.u32 %v156, 8388608
    %v158 = vsub.s32 0, %v157
    %v159 = vadd.s32 %v154, 1
    %vm160 = vcmp.gt.s32.totalorder %v159, 0
    %v161 = vsel %vm160, %v159, 0
    %v162 = vshrl.u32 %v161, 5
    %v163 = vand.u32 %v161, 31
    %v164 = vsub.s32 32, %v163
    %v165 = vshrl.u32 683565275, %v164
    %v166 = vshll.u32 683565275, %v163
    %v167 = vshrl.u32 2475754826, %v164
    %v168 = vor.u32 %v166, %v167
    %v169 = vshll.u32 2475754826, %v163
    %v170 = vshrl.u32 2131351028, %v164
    %v171 = vor.u32 %v169, %v170
    %v172 = vshll.u32 2131351028, %v163
    %v173 = vshrl.u32 2102212464, %v164
    %v174 = vor.u32 %v172, %v173
    %v175 = vshll.u32 2102212464, %v163
    %v176 = vshrl.u32 920167782, %v164
    %v177 = vor.u32 %v175, %v176
    %v178 = vshll.u32 920167782, %v163
    %v179 = vshrl.u32 1326507024, %v164
    %v180 = vor.u32 %v178, %v179
    %vm181 = vcmp.lt.s32.totalorder %v162, 1
    %vm182 = vcmp.lt.s32.totalorder %v162, 2
    %vm183 = vcmp.lt.s32.totalorder %v162, 3
    %vm184 = vcmp.lt.s32.totalorder %v162, 4
    %v185 = vsel %vm181, %v165, %v168
    %v186 = vsel %vm184, %v174, 2102212464
    %v187 = vsel %vm183, %v171, %v186
    %v188 = vsel %vm182, %v185, %v187
    %v189 = vsel %vm181, %v168, %v171
    %v190 = vsel %vm184, %v177, 920167782
    %v191 = vsel %vm183, %v174, %v190
    %v192 = vsel %vm182, %v189, %v191
    %v193 = vsel %vm181, %v171, %v174
    %v194 = vsel %vm184, %v180, 1326507024
    %v195 = vsel %vm183, %v177, %v194
    %v196 = vsel %vm182, %v193, %v195
    %v197 = vshll.u32 %v157, 8
    %v198 = vmul.u32.u64.compose %v197, %v196
    %v199 = vextract.low.u32 %v198
    %v200 = vextract.high.u32 %v198
    %v201 = vmul.u32.u64.compose %v197, %v192
    %v202 = vextract.low.u32 %v201
    %v203 = vextract.high.u32 %v201
    %v204 = vmul.u32 %v197, %v188
    %v205 = vadd.s32 %v200, %v202
    %vm206 = vc.u32 %v200, %v202
    %v207 = vadd.s32 %v203, 1
    %v208 = vsel %vm206, %v207, %v203
    %v209 = vadd.s32 %v204, %v208
    %v210 = vadd.s32 %v209, 536870912
    %v211 = vshrl.u32 %v210, 30
    %v212 = vshll.u32 %v211, 30
    %v213 = vsub.s32 %v209, %v212
    %vm214 = vcmp.lt.s32.totalorder %v213, 0
    %v215 = vsub.s32 0, %v213
    %v216 = vsel %vm214, %v215, %v213
    %v217 = vclz %v216
    %v218 = vsub.s32 %v217, 2
    %vm219 = vcmp.gt.s32.totalorder 0, %v218
    %v220 = vsel %vm219, 0, %v218
    %v221 = vsub.s32 32, %v220
    %v222 = vshll.u32 %v213, %v220
    %v223 = vshrl.u32 %v205, %v221
    %v224 = vor.u32 %v222, %v223
    %v225 = vsub.s32 4294967266, %v220
    %v226 = vadd.s32 %v225, 127
    %v227 = vshll.u32 %v226, 23
    %v228 = vor.u32 4788187, %v227
    %v229 = vand.u32 2147483647, %v228
    %v231 = vcvt.s32.f32 %v224
    %v232 = vmul.f32 %v231, %v229
    %v233 = vxor.u32 %v232, 2147483648
    %v234 = vsel %vm151, %v233, %v232
    %v235 = vsub.s32 4, %v211
    %v236 = vsel %vm151, %v235, %v211
    %v237 = vsel %vm150, %v44, %v234
    %v238 = vsel %vm150, 0, %v236
    %v239 = vcosq.f32.pop %v237
    %v240 = vsinq.f32.pop %v237
    %vm241 = vweird.f32 %v44
    %v242 = vand.u32 %v238, 3
    %vm243 = vcmp.lt.s32.totalorder %v242, 2
    %vm244 = vcmp.eq.s32.totalorder %v242, 0
    %v245 = vxor.u32 %v240, 2147483648
    %v246 = vsel %vm244, %v239, %v245
    %vm247 = vcmp.eq.s32.totalorder %v242, 2
    %v248 = vxor.u32 %v239, 2147483648
    %v249 = vsel %vm247, %v248, %v240
    %v250 = vsel %vm243, %v246, %v249
    %v251 = vsel %vm241, nan, %v250
    %v252 = vld [vmem:[#allocation2] sm:$0xff]
    %v253 = vld [vmem:[#allocation2 + $0x8] sm:$0xff]
    %v254 = vld [vmem:[#allocation2 + $0x10] sm:$0xff]
    %v255 = vld [vmem:[#allocation2 + $0x18] sm:$0xff]
    %260 = vrot.lane.b32.xlu0 %v252, 120
    %v261 = vpop.permute.xlu0 %260
    %262 = vrot.lane.b32.xlu0 %v253, 120
    %v263 = vpop.permute.xlu0 %262
    %264 = vrot.lane.b32.xlu0 %v254, 120
    %v265 = vpop.permute.xlu0 %264
    %266 = vrot.lane.b32.xlu0 %v255, 120
    %v267 = vpop.permute.xlu0 %266
    %vm268 = vcmask 64512
    %v269 = vsel %vm268, %v261, 0
    %v271 = vsel %vm268, %v263, 0
    %v273 = vsel %vm268, %v265, 0
    %v275 = vsel %vm268, %v267, 0
    %277 = vmatprep.subr.mxu0 0.0
    %278 = vmatpush1.msra.mxu0 %v251
    %279 = vmatprep.subr.mxu0 0.0
    %280 = vmatpush1.msra.mxu0 0.0
    %281 = vmatprep.subr.mxu0 0.0
    %282 = vmatpush1.msra.mxu0 0.0
    %283 = vmatprep.subr.mxu0 0.0
    %284 = vmatpush1.msra.mxu0 0.0
    %285 = vmatprep.subr.mxu0 0.0
    %286 = vmatpush1.msra.mxu0 0.0
    %287 = vmatprep.subr.mxu0 0.0
    %288 = vmatpush1.msra.mxu0 0.0
    %289 = vmatprep.subr.mxu0 0.0
    %290 = vmatpush1.msra.mxu0 0.0
    %291 = vmatprep.subr.mxu0 0.0
    %292 = vmatpush1.msra.mxu0 0.0
    %293 = vmatprep.subr.mxu0 0.0
    %294 = vmatpush1.msra.mxu0 0.0
    %295 = vmatprep.subr.mxu0 0.0
    %296 = vmatpush1.msra.mxu0 0.0
    %297 = vmatprep.subr.mxu0 0.0
    %298 = vmatpush1.msra.mxu0 0.0
    %299 = vmatprep.subr.mxu0 0.0
    %300 = vmatpush1.msra.mxu0 0.0
    %301 = vmatprep.subr.mxu0 0.0
    %302 = vmatpush1.msra.mxu0 0.0
    %303 = vmatprep.subr.mxu0 0.0
    %304 = vmatpush1.msra.mxu0 0.0
    %305 = vmatprep.subr.mxu0 0.0
    %306 = vmatpush1.msra.mxu0 0.0
    %307 = vmatprep.subr.mxu0 0.0
    %308 = vmatpush1.msra.mxu0 0.0
    %309 = vmatprep.subr.mxu0 0.0
    %310 = vmatpush1.msra.mxu0 0.0
    %311 = vmatprep.subr.mxu0 0.0
    %312 = vmatpush1.msra.mxu0 0.0
    %313 = vmatprep.subr.mxu0 0.0
    %314 = vmatpush1.msra.mxu0 0.0
    %315 = vmatprep.subr.mxu0 0.0
    %316 = vmatpush1.msra.mxu0 0.0
    %317 = vmatprep.subr.mxu0 0.0
    %318 = vmatpush1.msra.mxu0 0.0
    %319 = vmatprep.subr.mxu0 0.0
    %320 = vmatpush1.msra.mxu0 0.0
    %321 = vmatprep.subr.mxu0 0.0
    %322 = vmatpush1.msra.mxu0 0.0
    %323 = vmatprep.subr.mxu0 0.0
    %324 = vmatpush1.msra.mxu0 0.0
    %325 = vmatprep.subr.mxu0 0.0
    %326 = vmatpush1.msra.mxu0 0.0
    %327 = vmatprep.subr.mxu0 0.0
    %328 = vmatpush1.msra.mxu0 0.0
    %329 = vmatprep.subr.mxu0 0.0
    %330 = vmatpush1.msra.mxu0 0.0
    %331 = vmatprep.subr.mxu0 0.0
    %332 = vmatpush1.msra.mxu0 0.0
    %333 = vmatprep.subr.mxu0 0.0
    %334 = vmatpush1.msra.mxu0 0.0
    %335 = vmatprep.subr.mxu0 0.0
    %336 = vmatpush1.msra.mxu0 0.0
    %337 = vmatprep.subr.mxu0 0.0
    %338 = vmatpush1.msra.mxu0 0.0
    %339 = vmatprep.subr.mxu0 0.0
    %340 = vmatpush1.msra.mxu0 0.0
    %341 = vmatprep.mubr.f32.mxu0 0.0
    %342 = vmatmul.mubr.f32.gmra.mrb[0].mxu0 %v269
    %v343 = vpop.f32.mrb[0].mxu0
    %v344 = vadd.f32 0.0, %v343
    %v345 = vpop.f32.mrb[0].mxu0
    %346 = vmatprep.mubr.f32.mxu0 0.0
    %347 = vmatmul.mubr.f32.gmra.mrb[0].mxu0 %v271
    %v348 = vpop.f32.mrb[0].mxu0
    %v349 = vadd.f32 0.0, %v348
    %v350 = vpop.f32.mrb[0].mxu0
    %351 = vmatprep.mubr.f32.mxu0 0.0
    %352 = vmatmul.mubr.f32.gmra.mrb[0].mxu0 %v273
    %v353 = vpop.f32.mrb[0].mxu0
    %v354 = vadd.f32 0.0, %v353
    %v355 = vpop.f32.mrb[0].mxu0
    %356 = vmatprep.mubr.f32.mxu0 0.0
    %357 = vmatmul.mubr.f32.gmra.mrb[0].mxu0 %v275
    %v358 = vpop.f32.mrb[0].mxu0
    %v359 = vadd.f32 0.0, %v358
    %v360 = vpop.f32.mrb[0].mxu0
    %361 = vdwg.mxu0
    %v362 = vsel %vm268, %v252, 0
    %v364 = vsel %vm268, %v253, 0
    %v366 = vsel %vm268, %v254, 0
    %v368 = vsel %vm268, %v255, 0
    %370 = vmatprep.subr.mxu0 0.0
    %371 = vmatpush1.msra.mxu0 %v148
    %372 = vmatprep.subr.mxu0 0.0
    %373 = vmatpush1.msra.mxu0 0.0
    %374 = vmatprep.subr.mxu0 0.0
    %375 = vmatpush1.msra.mxu0 0.0
    %376 = vmatprep.subr.mxu0 0.0
    %377 = vmatpush1.msra.mxu0 0.0
    %378 = vmatprep.subr.mxu0 0.0
    %379 = vmatpush1.msra.mxu0 0.0
    %380 = vmatprep.subr.mxu0 0.0
    %381 = vmatpush1.msra.mxu0 0.0
    %382 = vmatprep.subr.mxu0 0.0
    %383 = vmatpush1.msra.mxu0 0.0
    %384 = vmatprep.subr.mxu0 0.0
    %385 = vmatpush1.msra.mxu0 0.0
    %386 = vmatprep.subr.mxu0 0.0
    %387 = vmatpush1.msra.mxu0 0.0
    %388 = vmatprep.subr.mxu0 0.0
    %389 = vmatpush1.msra.mxu0 0.0
    %390 = vmatprep.subr.mxu0 0.0
    %391 = vmatpush1.msra.mxu0 0.0
    %392 = vmatprep.subr.mxu0 0.0
    %393 = vmatpush1.msra.mxu0 0.0
    %394 = vmatprep.subr.mxu0 0.0
    %395 = vmatpush1.msra.mxu0 0.0
    %396 = vmatprep.subr.mxu0 0.0
    %397 = vmatpush1.msra.mxu0 0.0
    %398 = vmatprep.subr.mxu0 0.0
    %399 = vmatpush1.msra.mxu0 0.0
    %400 = vmatprep.subr.mxu0 0.0
    %401 = vmatpush1.msra.mxu0 0.0
    %402 = vmatprep.subr.mxu0 0.0
    %403 = vmatpush1.msra.mxu0 0.0
    %404 = vmatprep.subr.mxu0 0.0
    %405 = vmatpush1.msra.mxu0 0.0
    %406 = vmatprep.subr.mxu0 0.0
    %407 = vmatpush1.msra.mxu0 0.0
    %408 = vmatprep.subr.mxu0 0.0
    %409 = vmatpush1.msra.mxu0 0.0
    %410 = vmatprep.subr.mxu0 0.0
    %411 = vmatpush1.msra.mxu0 0.0
    %412 = vmatprep.subr.mxu0 0.0
    %413 = vmatpush1.msra.mxu0 0.0
    %414 = vmatprep.subr.mxu0 0.0
    %415 = vmatpush1.msra.mxu0 0.0
    %416 = vmatprep.subr.mxu0 0.0
    %417 = vmatpush1.msra.mxu0 0.0
    %418 = vmatprep.subr.mxu0 0.0
    %419 = vmatpush1.msra.mxu0 0.0
    %420 = vmatprep.subr.mxu0 0.0
    %421 = vmatpush1.msra.mxu0 0.0
    %422 = vmatprep.subr.mxu0 0.0
    %423 = vmatpush1.msra.mxu0 0.0
    %424 = vmatprep.subr.mxu0 0.0
    %425 = vmatpush1.msra.mxu0 0.0
    %426 = vmatprep.subr.mxu0 0.0
    %427 = vmatpush1.msra.mxu0 0.0
    %428 = vmatprep.subr.mxu0 0.0
    %429 = vmatpush1.msra.mxu0 0.0
    %430 = vmatprep.subr.mxu0 0.0
    %431 = vmatpush1.msra.mxu0 0.0
    %432 = vmatprep.subr.mxu0 0.0
    %433 = vmatpush1.msra.mxu0 0.0
    %434 = vmatprep.mubr.f32.mxu0 0.0
    %435 = vmatmul.mubr.f32.gmra.mrb[0].mxu0 %v362
    %v436 = vpop.f32.mrb[0].mxu0
    %v437 = vadd.f32 %v344, %v436
    %v438 = vpop.f32.mrb[0].mxu0
    %439 = vmatprep.mubr.f32.mxu0 0.0
    %440 = vmatmul.mubr.f32.gmra.mrb[0].mxu0 %v364
    %v441 = vpop.f32.mrb[0].mxu0
    %v442 = vadd.f32 %v349, %v441
    %v443 = vpop.f32.mrb[0].mxu0
    %444 = vmatprep.mubr.f32.mxu0 0.0
    %445 = vmatmul.mubr.f32.gmra.mrb[0].mxu0 %v366
    %v446 = vpop.f32.mrb[0].mxu0
    %v447 = vadd.f32 %v354, %v446
    %v448 = vpop.f32.mrb[0].mxu0
    %449 = vmatprep.mubr.f32.mxu0 0.0
    %450 = vmatmul.mubr.f32.gmra.mrb[0].mxu0 %v368
    %v451 = vpop.f32.mrb[0].mxu0
    %v452 = vadd.f32 %v359, %v451
    %v453 = vpop.f32.mrb[0].mxu0
    %454 = vdwg.mxu0
    %455 = vrot.lane.b32.xlu0 %v252, 112
    %v456 = vpop.permute.xlu0 %455
    %457 = vrot.lane.b32.xlu0 %v253, 112
    %v458 = vpop.permute.xlu0 %457
    %459 = vrot.lane.b32.xlu0 %v254, 112
    %v460 = vpop.permute.xlu0 %459
    %461 = vrot.lane.b32.xlu0 %v255, 112
    %v462 = vpop.permute.xlu0 %461
    %vm463 = vcmask 39936
    %v464 = vsel %vm463, %v456, 0
    %v466 = vsel %vm463, %v458, 0
    %v468 = vsel %vm463, %v460, 0
    %v470 = vsel %vm463, %v462, 0
    %vm472 = vcmask 1044480
    %v474 = vsel %vm472, %v29, 0
    %476 = vmatprep.subr.mxu0 0.0
    %477 = vmatpush1.msra.mxu0 %v474
    %478 = vmatprep.subr.mxu0 0.0
    %479 = vmatpush1.msra.mxu0 0.0
    %480 = vmatprep.subr.mxu0 0.0
    %481 = vmatpush1.msra.mxu0 0.0
    %482 = vmatprep.subr.mxu0 0.0
    %483 = vmatpush1.msra.mxu0 0.0
    %484 = vmatprep.subr.mxu0 0.0
    %485 = vmatpush1.msra.mxu0 0.0
    %486 = vmatprep.subr.mxu0 0.0
    %487 = vmatpush1.msra.mxu0 0.0
    %488 = vmatprep.subr.mxu0 0.0
    %489 = vmatpush1.msra.mxu0 0.0
    %490 = vmatprep.subr.mxu0 0.0
    %491 = vmatpush1.msra.mxu0 0.0
    %492 = vmatprep.subr.mxu0 0.0
    %493 = vmatpush1.msra.mxu0 0.0
    %494 = vmatprep.subr.mxu0 0.0
    %495 = vmatpush1.msra.mxu0 0.0
    %496 = vmatprep.subr.mxu0 0.0
    %497 = vmatpush1.msra.mxu0 0.0
    %498 = vmatprep.subr.mxu0 0.0
    %499 = vmatpush1.msra.mxu0 0.0
    %500 = vmatprep.subr.mxu0 0.0
    %501 = vmatpush1.msra.mxu0 0.0
    %502 = vmatprep.subr.mxu0 0.0
    %503 = vmatpush1.msra.mxu0 0.0
    %504 = vmatprep.subr.mxu0 0.0
    %505 = vmatpush1.msra.mxu0 0.0
    %506 = vmatprep.subr.mxu0 0.0
    %507 = vmatpush1.msra.mxu0 0.0
    %508 = vmatprep.subr.mxu0 0.0
    %509 = vmatpush1.msra.mxu0 0.0
    %510 = vmatprep.subr.mxu0 0.0
    %511 = vmatpush1.msra.mxu0 0.0
    %512 = vmatprep.subr.mxu0 0.0
    %513 = vmatpush1.msra.mxu0 0.0
    %514 = vmatprep.subr.mxu0 0.0
    %515 = vmatpush1.msra.mxu0 0.0
    %516 = vmatprep.subr.mxu0 0.0
    %517 = vmatpush1.msra.mxu0 0.0
    %518 = vmatprep.subr.mxu0 0.0
    %519 = vmatpush1.msra.mxu0 0.0
    %520 = vmatprep.subr.mxu0 0.0
    %521 = vmatpush1.msra.mxu0 0.0
    %522 = vmatprep.subr.mxu0 0.0
    %523 = vmatpush1.msra.mxu0 0.0
    %524 = vmatprep.subr.mxu0 0.0
    %525 = vmatpush1.msra.mxu0 0.0
    %526 = vmatprep.subr.mxu0 0.0
    %527 = vmatpush1.msra.mxu0 0.0
    %528 = vmatprep.subr.mxu0 0.0
    %529 = vmatpush1.msra.mxu0 0.0
    %530 = vmatprep.subr.mxu0 0.0
    %531 = vmatpush1.msra.mxu0 0.0
    %532 = vmatprep.subr.mxu0 0.0
    %533 = vmatpush1.msra.mxu0 0.0
    %534 = vmatprep.subr.mxu0 0.0
    %535 = vmatpush1.msra.mxu0 0.0
    %536 = vmatprep.subr.mxu0 0.0
    %537 = vmatpush1.msra.mxu0 0.0
    %538 = vmatprep.subr.mxu0 0.0
    %539 = vmatpush1.msra.mxu0 0.0
    %540 = vmatprep.mubr.f32.mxu0 0.0
    %541 = vmatmul.mubr.f32.gmra.mrb[0].mxu0 %v464
    %v542 = vpop.f32.mrb[0].mxu0
    %v543 = vadd.f32 0.0, %v542
    %v544 = vpop.f32.mrb[0].mxu0
    %545 = vmatprep.mubr.f32.mxu0 0.0
    %546 = vmatmul.mubr.f32.gmra.mrb[0].mxu0 %v466
    %v547 = vpop.f32.mrb[0].mxu0
    %v548 = vadd.f32 0.0, %v547
    %v549 = vpop.f32.mrb[0].mxu0
    %550 = vmatprep.mubr.f32.mxu0 0.0
    %551 = vmatmul.mubr.f32.gmra.mrb[0].mxu0 %v468
    %v552 = vpop.f32.mrb[0].mxu0
    %v553 = vadd.f32 0.0, %v552
    %v554 = vpop.f32.mrb[0].mxu0
    %555 = vmatprep.mubr.f32.mxu0 0.0
    %556 = vmatmul.mubr.f32.gmra.mrb[0].mxu0 %v470
    %v557 = vpop.f32.mrb[0].mxu0
    %v558 = vadd.f32 0.0, %v557
    %v559 = vpop.f32.mrb[0].mxu0
    %560 = vdwg.mxu0
    %v561 = vadd.f32 %v437, %v543
    %v562 = vadd.f32 %v442, %v548
    %v563 = vadd.f32 %v447, %v553
    %v564 = vadd.f32 %v452, %v558
    %565 = vset.pattern.permute.xlu0 1
    %566 = vperm.xlu0 %565, %v30
    %v567 = vpop.permute.xlu0 %566
    %570 = vset.pattern.permute.xlu0 1
    %571 = vperm.xlu0 %570, %v31
    %v572 = vpop.permute.xlu0 %571
    %575 = vset.pattern.permute.xlu0 1
    %576 = vperm.xlu0 %575, %v32
    %v577 = vpop.permute.xlu0 %576
    %580 = vset.pattern.permute.xlu0 1
    %581 = vperm.xlu0 %580, %v33
    %v582 = vpop.permute.xlu0 %581
    %v584 = vadd.f32 %v561, %v567
    %v585 = vadd.f32 %v562, %v572
    %v586 = vadd.f32 %v563, %v577
    %v587 = vadd.f32 %v564, %v582
    %v588 = vxor.u32 %v584, 2147483648
    %v589 = vxor.u32 %v585, 2147483648
    %v590 = vxor.u32 %v586, 2147483648
    %v591 = vxor.u32 %v587, 2147483648
    %v592 = vmul.f32 %v588, 1.442695
    %v593 = vpow.pop %v592
    %v594 = vmul.f32 %v589, 1.442695
    %v595 = vpow.pop %v594
    %v596 = vmul.f32 %v590, 1.442695
    %v597 = vpow.pop %v596
    %v598 = vmul.f32 %v591, 1.442695
    %v599 = vpow.pop %v598
    %v600 = vadd.f32 %v593, 1.0
    %v601 = vadd.f32 %v595, 1.0
    %v602 = vadd.f32 %v597, 1.0
    %v603 = vadd.f32 %v599, 1.0
    %v604 = vrcp.pop %v600
    %v605 = vmul.f32 1.0, %v604
    %v606 = vrcp.pop %v601
    %v607 = vmul.f32 1.0, %v606
    %v608 = vrcp.pop %v602
    %v609 = vmul.f32 1.0, %v608
    %v610 = vrcp.pop %v603
    %v611 = vmul.f32 1.0, %v610
    %v612 = vmul.f32 %v584, %v605
    %v613 = vmul.f32 %v585, %v607
    %v614 = vmul.f32 %v586, %v609
    %v615 = vmul.f32 %v587, %v611
    %s616 = scalar_lea.vmem [#allocation2], 32
    %v617 = vld [vmem:[%s616] sm:$0xff]
    %v618 = vld [vmem:[%s616 + $0x8] sm:$0xff]
    %v619 = vld [vmem:[%s616 + $0x10] sm:$0xff]
    %v620 = vld [vmem:[%s616 + $0x18] sm:$0xff]
    %621 = vset.pattern.permute.xlu0 2
    %622 = vperm.xlu0 %621, %v30
    %v623 = vpop.permute.xlu0 %622
    %625 = vset.pattern.permute.xlu0 2
    %626 = vperm.xlu0 %625, %v31
    %v627 = vpop.permute.xlu0 %626
    %629 = vset.pattern.permute.xlu0 2
    %630 = vperm.xlu0 %629, %v32
    %v631 = vpop.permute.xlu0 %630
    %633 = vset.pattern.permute.xlu0 2
    %634 = vperm.xlu0 %633, %v33
    %v635 = vpop.permute.xlu0 %634
    %vm637 = vcmask 261120
    %v639 = vsel %vm637, %v617, 0
    %v642 = vsel %vm637, %v618, 0
    %v645 = vsel %vm637, %v619, 0
    %v648 = vsel %vm637, %v620, 0
    %650 = vmatprep.subr.mxu0 0.0
    %651 = vmatpush1.msra.mxu0 %v612
    %652 = vmatprep.subr.mxu0 0.0
    %653 = vmatpush1.msra.mxu0 %v613
    %654 = vmatprep.subr.mxu0 0.0
    %655 = vmatpush1.msra.mxu0 %v614
    %656 = vmatprep.subr.mxu0 0.0
    %657 = vmatpush1.msra.mxu0 %v615
    %658 = vmatprep.subr.mxu0 0.0
    %659 = vmatpush1.msra.mxu0 0.0
    %660 = vmatprep.subr.mxu0 0.0
    %661 = vmatpush1.msra.mxu0 0.0
    %662 = vmatprep.subr.mxu0 0.0
    %663 = vmatpush1.msra.mxu0 0.0
    %664 = vmatprep.subr.mxu0 0.0
    %665 = vmatpush1.msra.mxu0 0.0
    %666 = vmatprep.subr.mxu0 0.0
    %667 = vmatpush1.msra.mxu0 0.0
    %668 = vmatprep.subr.mxu0 0.0
    %669 = vmatpush1.msra.mxu0 0.0
    %670 = vmatprep.subr.mxu0 0.0
    %671 = vmatpush1.msra.mxu0 0.0
    %672 = vmatprep.subr.mxu0 0.0
    %673 = vmatpush1.msra.mxu0 0.0
    %674 = vmatprep.subr.mxu0 0.0
    %675 = vmatpush1.msra.mxu0 0.0
    %676 = vmatprep.subr.mxu0 0.0
    %677 = vmatpush1.msra.mxu0 0.0
    %678 = vmatprep.subr.mxu0 0.0
    %679 = vmatpush1.msra.mxu0 0.0
    %680 = vmatprep.subr.mxu0 0.0
    %681 = vmatpush1.msra.mxu0 0.0
    %682 = vmatprep.subr.mxu0 0.0
    %683 = vmatpush1.msra.mxu0 0.0
    %684 = vmatprep.subr.mxu0 0.0
    %685 = vmatpush1.msra.mxu0 0.0
    %686 = vmatprep.subr.mxu0 0.0
    %687 = vmatpush1.msra.mxu0 0.0
    %688 = vmatprep.subr.mxu0 0.0
    %689 = vmatpush1.msra.mxu0 0.0
    %690 = vmatprep.subr.mxu0 0.0
    %691 = vmatpush1.msra.mxu0 0.0
    %692 = vmatprep.subr.mxu0 0.0
    %693 = vmatpush1.msra.mxu0 0.0
    %694 = vmatprep.subr.mxu0 0.0
    %695 = vmatpush1.msra.mxu0 0.0
    %696 = vmatprep.subr.mxu0 0.0
    %697 = vmatpush1.msra.mxu0 0.0
    %698 = vmatprep.subr.mxu0 0.0
    %699 = vmatpush1.msra.mxu0 0.0
    %700 = vmatprep.subr.mxu0 0.0
    %701 = vmatpush1.msra.mxu0 0.0
    %702 = vmatprep.subr.mxu0 0.0
    %703 = vmatpush1.msra.mxu0 0.0
    %704 = vmatprep.subr.mxu0 0.0
    %705 = vmatpush1.msra.mxu0 0.0
    %706 = vmatprep.subr.mxu0 0.0
    %707 = vmatpush1.msra.mxu0 0.0
    %708 = vmatprep.subr.mxu0 0.0
    %709 = vmatpush1.msra.mxu0 0.0
    %710 = vmatprep.subr.mxu0 0.0
    %711 = vmatpush1.msra.mxu0 0.0
    %712 = vmatprep.subr.mxu0 0.0
    %713 = vmatpush1.msra.mxu0 0.0
    %714 = vmatprep.mubr.f32.mxu0 0.0
    %715 = vmatmul.mubr.f32.gmra.mrb[0].mxu0 %v639
    %v716 = vpop.f32.mrb[0].mxu0
    %v717 = vadd.f32 %v623, %v716
    %v718 = vpop.f32.mrb[0].mxu0
    %719 = vmatprep.mubr.f32.mxu0 0.0
    %720 = vmatmul.mubr.f32.gmra.mrb[0].mxu0 %v642
    %v721 = vpop.f32.mrb[0].mxu0
    %v722 = vadd.f32 %v627, %v721
    %v723 = vpop.f32.mrb[0].mxu0
    %724 = vmatprep.mubr.f32.mxu0 0.0
    %725 = vmatmul.mubr.f32.gmra.mrb[0].mxu0 %v645
    %v726 = vpop.f32.mrb[0].mxu0
    %v727 = vadd.f32 %v631, %v726
    %v728 = vpop.f32.mrb[0].mxu0
    %729 = vmatprep.mubr.f32.mxu0 0.0
    %730 = vmatmul.mubr.f32.gmra.mrb[0].mxu0 %v648
    %v731 = vpop.f32.mrb[0].mxu0
    %v732 = vadd.f32 %v635, %v731
    %v733 = vpop.f32.mrb[0].mxu0
    %734 = vdwg.mxu0
    %v735 = vxor.u32 %v717, 2147483648
    %v736 = vxor.u32 %v722, 2147483648
    %v737 = vxor.u32 %v727, 2147483648
    %v738 = vxor.u32 %v732, 2147483648
    %v739 = vmul.f32 %v735, 1.442695
    %v740 = vpow.pop %v739
    %v741 = vmul.f32 %v736, 1.442695
    %v742 = vpow.pop %v741
    %v743 = vmul.f32 %v737, 1.442695
    %v744 = vpow.pop %v743
    %v745 = vmul.f32 %v738, 1.442695
    %v746 = vpow.pop %v745
    %v747 = vadd.f32 %v740, 1.0
    %v748 = vadd.f32 %v742, 1.0
    %v749 = vadd.f32 %v744, 1.0
    %v750 = vadd.f32 %v746, 1.0
    %v751 = vrcp.pop %v747
    %v752 = vmul.f32 1.0, %v751
    %v753 = vrcp.pop %v748
    %v754 = vmul.f32 1.0, %v753
    %v755 = vrcp.pop %v749
    %v756 = vmul.f32 1.0, %v755
    %v757 = vrcp.pop %v750
    %v758 = vmul.f32 1.0, %v757
    %v759 = vmul.f32 %v717, %v752
    %v760 = vmul.f32 %v722, %v754
    %v761 = vmul.f32 %v727, %v756
    %v762 = vmul.f32 %v732, %v758
    %s763 = scalar_lea.vmem [#allocation2], 64
    %v764 = vld [vmem:[%s763] sm:$0xff]
    %v765 = vld [vmem:[%s763 + $0x8] sm:$0xff]
    %v766 = vld [vmem:[%s763 + $0x10] sm:$0xff]
    %v767 = vld [vmem:[%s763 + $0x18] sm:$0xff]
    %768 = vset.pattern.permute.xlu0 3
    %769 = vperm.xlu0 %768, %v30
    %v770 = vpop.permute.xlu0 %769
    %772 = vset.pattern.permute.xlu0 3
    %773 = vperm.xlu0 %772, %v31
    %v774 = vpop.permute.xlu0 %773
    %776 = vset.pattern.permute.xlu0 3
    %777 = vperm.xlu0 %776, %v32
    %v778 = vpop.permute.xlu0 %777
    %780 = vset.pattern.permute.xlu0 3
    %781 = vperm.xlu0 %780, %v33
    %v782 = vpop.permute.xlu0 %781
    %v785 = vsel %vm637, %v764, 0
    %v788 = vsel %vm637, %v765, 0
    %v791 = vsel %vm637, %v766, 0
    %v794 = vsel %vm637, %v767, 0
    %796 = vmatprep.subr.mxu0 0.0
    %797 = vmatpush1.msra.mxu0 %v759
    %798 = vmatprep.subr.mxu0 0.0
    %799 = vmatpush1.msra.mxu0 %v760
    %800 = vmatprep.subr.mxu0 0.0
    %801 = vmatpush1.msra.mxu0 %v761
    %802 = vmatprep.subr.mxu0 0.0
    %803 = vmatpush1.msra.mxu0 %v762
    %804 = vmatprep.subr.mxu0 0.0
    %805 = vmatpush1.msra.mxu0 0.0
    %806 = vmatprep.subr.mxu0 0.0
    %807 = vmatpush1.msra.mxu0 0.0
    %808 = vmatprep.subr.mxu0 0.0
    %809 = vmatpush1.msra.mxu0 0.0
    %810 = vmatprep.subr.mxu0 0.0
    %811 = vmatpush1.msra.mxu0 0.0
    %812 = vmatprep.subr.mxu0 0.0
    %813 = vmatpush1.msra.mxu0 0.0
    %814 = vmatprep.subr.mxu0 0.0
    %815 = vmatpush1.msra.mxu0 0.0
    %816 = vmatprep.subr.mxu0 0.0
    %817 = vmatpush1.msra.mxu0 0.0
    %818 = vmatprep.subr.mxu0 0.0
    %819 = vmatpush1.msra.mxu0 0.0
    %820 = vmatprep.subr.mxu0 0.0
    %821 = vmatpush1.msra.mxu0 0.0
    %822 = vmatprep.subr.mxu0 0.0
    %823 = vmatpush1.msra.mxu0 0.0
    %824 = vmatprep.subr.mxu0 0.0
    %825 = vmatpush1.msra.mxu0 0.0
    %826 = vmatprep.subr.mxu0 0.0
    %827 = vmatpush1.msra.mxu0 0.0
    %828 = vmatprep.subr.mxu0 0.0
    %829 = vmatpush1.msra.mxu0 0.0
    %830 = vmatprep.subr.mxu0 0.0
    %831 = vmatpush1.msra.mxu0 0.0
    %832 = vmatprep.subr.mxu0 0.0
    %833 = vmatpush1.msra.mxu0 0.0
    %834 = vmatprep.subr.mxu0 0.0
    %835 = vmatpush1.msra.mxu0 0.0
    %836 = vmatprep.subr.mxu0 0.0
    %837 = vmatpush1.msra.mxu0 0.0
    %838 = vmatprep.subr.mxu0 0.0
    %839 = vmatpush1.msra.mxu0 0.0
    %840 = vmatprep.subr.mxu0 0.0
    %841 = vmatpush1.msra.mxu0 0.0
    %842 = vmatprep.subr.mxu0 0.0
    %843 = vmatpush1.msra.mxu0 0.0
    %844 = vmatprep.subr.mxu0 0.0
    %845 = vmatpush1.msra.mxu0 0.0
    %846 = vmatprep.subr.mxu0 0.0
    %847 = vmatpush1.msra.mxu0 0.0
    %848 = vmatprep.subr.mxu0 0.0
    %849 = vmatpush1.msra.mxu0 0.0
    %850 = vmatprep.subr.mxu0 0.0
    %851 = vmatpush1.msra.mxu0 0.0
    %852 = vmatprep.subr.mxu0 0.0
    %853 = vmatpush1.msra.mxu0 0.0
    %854 = vmatprep.subr.mxu0 0.0
    %855 = vmatpush1.msra.mxu0 0.0
    %856 = vmatprep.subr.mxu0 0.0
    %857 = vmatpush1.msra.mxu0 0.0
    %858 = vmatprep.subr.mxu0 0.0
    %859 = vmatpush1.msra.mxu0 0.0
    %860 = vmatprep.mubr.f32.mxu0 0.0
    %861 = vmatmul.mubr.f32.gmra.mrb[0].mxu0 %v785
    %v862 = vpop.f32.mrb[0].mxu0
    %v863 = vadd.f32 %v770, %v862
    %v864 = vpop.f32.mrb[0].mxu0
    %865 = vmatprep.mubr.f32.mxu0 0.0
    %866 = vmatmul.mubr.f32.gmra.mrb[0].mxu0 %v788
    %v867 = vpop.f32.mrb[0].mxu0
    %v868 = vadd.f32 %v774, %v867
    %v869 = vpop.f32.mrb[0].mxu0
    %870 = vmatprep.mubr.f32.mxu0 0.0
    %871 = vmatmul.mubr.f32.gmra.mrb[0].mxu0 %v791
    %v872 = vpop.f32.mrb[0].mxu0
    %v873 = vadd.f32 %v778, %v872
    %v874 = vpop.f32.mrb[0].mxu0
    %875 = vmatprep.mubr.f32.mxu0 0.0
    %876 = vmatmul.mubr.f32.gmra.mrb[0].mxu0 %v794
    %v877 = vpop.f32.mrb[0].mxu0
    %v878 = vadd.f32 %v782, %v877
    %v879 = vpop.f32.mrb[0].mxu0
    %880 = vdwg.mxu0
    %v881 = vxor.u32 %v863, 2147483648
    %v882 = vxor.u32 %v868, 2147483648
    %v883 = vxor.u32 %v873, 2147483648
    %v884 = vxor.u32 %v878, 2147483648
    %v885 = vmul.f32 %v881, 1.442695
    %v886 = vpow.pop %v885
    %v887 = vmul.f32 %v882, 1.442695
    %v888 = vpow.pop %v887
    %v889 = vmul.f32 %v883, 1.442695
    %v890 = vpow.pop %v889
    %v891 = vmul.f32 %v884, 1.442695
    %v892 = vpow.pop %v891
    %v893 = vadd.f32 %v886, 1.0
    %v894 = vadd.f32 %v888, 1.0
    %v895 = vadd.f32 %v890, 1.0
    %v896 = vadd.f32 %v892, 1.0
    %v897 = vrcp.pop %v893
    %v898 = vmul.f32 1.0, %v897
    %v899 = vrcp.pop %v894
    %v900 = vmul.f32 1.0, %v899
    %v901 = vrcp.pop %v895
    %v902 = vmul.f32 1.0, %v901
    %v903 = vrcp.pop %v896
    %v904 = vmul.f32 1.0, %v903
    %v905 = vmul.f32 %v863, %v898
    %v906 = vmul.f32 %v868, %v900
    %v907 = vmul.f32 %v873, %v902
    %v908 = vmul.f32 %v878, %v904
    %s909 = scalar_lea.vmem [#allocation2], 96
    %v910 = vld [vmem:[%s909] sm:$0xff]
    %v911 = vld [vmem:[%s909 + $0x8] sm:$0xff]
    %v912 = vld [vmem:[%s909 + $0x10] sm:$0xff]
    %v913 = vld [vmem:[%s909 + $0x18] sm:$0xff]
    %914 = vset.pattern.permute.xlu0 4
    %915 = vperm.xlu0 %914, %v30
    %v916 = vpop.permute.xlu0 %915
    %918 = vset.pattern.permute.xlu0 4
    %919 = vperm.xlu0 %918, %v31
    %v920 = vpop.permute.xlu0 %919
    %922 = vset.pattern.permute.xlu0 4
    %923 = vperm.xlu0 %922, %v32
    %v924 = vpop.permute.xlu0 %923
    %926 = vset.pattern.permute.xlu0 4
    %927 = vperm.xlu0 %926, %v33
    %v928 = vpop.permute.xlu0 %927
    %v931 = vsel %vm637, %v910, 0
    %v934 = vsel %vm637, %v911, 0
    %v937 = vsel %vm637, %v912, 0
    %v940 = vsel %vm637, %v913, 0
    %942 = vmatprep.subr.mxu0 0.0
    %943 = vmatpush1.msra.mxu0 %v905
    %944 = vmatprep.subr.mxu0 0.0
    %945 = vmatpush1.msra.mxu0 %v906
    %946 = vmatprep.subr.mxu0 0.0
    %947 = vmatpush1.msra.mxu0 %v907
    %948 = vmatprep.subr.mxu0 0.0
    %949 = vmatpush1.msra.mxu0 %v908
    %950 = vmatprep.subr.mxu0 0.0
    %951 = vmatpush1.msra.mxu0 0.0
    %952 = vmatprep.subr.mxu0 0.0
    %953 = vmatpush1.msra.mxu0 0.0
    %954 = vmatprep.subr.mxu0 0.0
    %955 = vmatpush1.msra.mxu0 0.0
    %956 = vmatprep.subr.mxu0 0.0
    %957 = vmatpush1.msra.mxu0 0.0
    %958 = vmatprep.subr.mxu0 0.0
    %959 = vmatpush1.msra.mxu0 0.0
    %960 = vmatprep.subr.mxu0 0.0
    %961 = vmatpush1.msra.mxu0 0.0
    %962 = vmatprep.subr.mxu0 0.0
    %963 = vmatpush1.msra.mxu0 0.0
    %964 = vmatprep.subr.mxu0 0.0
    %965 = vmatpush1.msra.mxu0 0.0
    %966 = vmatprep.subr.mxu0 0.0
    %967 = vmatpush1.msra.mxu0 0.0
    %968 = vmatprep.subr.mxu0 0.0
    %969 = vmatpush1.msra.mxu0 0.0
    %970 = vmatprep.subr.mxu0 0.0
    %971 = vmatpush1.msra.mxu0 0.0
    %972 = vmatprep.subr.mxu0 0.0
    %973 = vmatpush1.msra.mxu0 0.0
    %974 = vmatprep.subr.mxu0 0.0
    %975 = vmatpush1.msra.mxu0 0.0
    %976 = vmatprep.subr.mxu0 0.0
    %977 = vmatpush1.msra.mxu0 0.0
    %978 = vmatprep.subr.mxu0 0.0
    %979 = vmatpush1.msra.mxu0 0.0
    %980 = vmatprep.subr.mxu0 0.0
    %981 = vmatpush1.msra.mxu0 0.0
    %982 = vmatprep.subr.mxu0 0.0
    %983 = vmatpush1.msra.mxu0 0.0
    %984 = vmatprep.subr.mxu0 0.0
    %985 = vmatpush1.msra.mxu0 0.0
    %986 = vmatprep.subr.mxu0 0.0
    %987 = vmatpush1.msra.mxu0 0.0
    %988 = vmatprep.subr.mxu0 0.0
    %989 = vmatpush1.msra.mxu0 0.0
    %990 = vmatprep.subr.mxu0 0.0
    %991 = vmatpush1.msra.mxu0 0.0
    %992 = vmatprep.subr.mxu0 0.0
    %993 = vmatpush1.msra.mxu0 0.0
    %994 = vmatprep.subr.mxu0 0.0
    %995 = vmatpush1.msra.mxu0 0.0
    %996 = vmatprep.subr.mxu0 0.0
    %997 = vmatpush1.msra.mxu0 0.0
    %998 = vmatprep.subr.mxu0 0.0
    %999 = vmatpush1.msra.mxu0 0.0
    %1000 = vmatprep.subr.mxu0 0.0
    %1001 = vmatpush1.msra.mxu0 0.0
    %1002 = vmatprep.subr.mxu0 0.0
    %1003 = vmatpush1.msra.mxu0 0.0
    %1004 = vmatprep.subr.mxu0 0.0
    %1005 = vmatpush1.msra.mxu0 0.0
    %1006 = vmatprep.mubr.f32.mxu0 0.0
    %1007 = vmatmul.mubr.f32.gmra.mrb[0].mxu0 %v931
    %v1008 = vpop.f32.mrb[0].mxu0
    %v1009 = vadd.f32 %v916, %v1008
    %v1010 = vpop.f32.mrb[0].mxu0
    %1011 = vmatprep.mubr.f32.mxu0 0.0
    %1012 = vmatmul.mubr.f32.gmra.mrb[0].mxu0 %v934
    %v1013 = vpop.f32.mrb[0].mxu0
    %v1014 = vadd.f32 %v920, %v1013
    %v1015 = vpop.f32.mrb[0].mxu0
    %1016 = vmatprep.mubr.f32.mxu0 0.0
    %1017 = vmatmul.mubr.f32.gmra.mrb[0].mxu0 %v937
    %v1018 = vpop.f32.mrb[0].mxu0
    %v1019 = vadd.f32 %v924, %v1018
    %v1020 = vpop.f32.mrb[0].mxu0
    %1021 = vmatprep.mubr.f32.mxu0 0.0
    %1022 = vmatmul.mubr.f32.gmra.mrb[0].mxu0 %v940
    %v1023 = vpop.f32.mrb[0].mxu0
    %v1024 = vadd.f32 %v928, %v1023
    %v1025 = vpop.f32.mrb[0].mxu0
    %1026 = vdwg.mxu0
    %v1027 = vxor.u32 %v1009, 2147483648
    %v1028 = vxor.u32 %v1014, 2147483648
    %v1029 = vxor.u32 %v1019, 2147483648
    %v1030 = vxor.u32 %v1024, 2147483648
    %v1031 = vmul.f32 %v1027, 1.442695
    %v1032 = vpow.pop %v1031
    %v1033 = vmul.f32 %v1028, 1.442695
    %v1034 = vpow.pop %v1033
    %v1035 = vmul.f32 %v1029, 1.442695
    %v1036 = vpow.pop %v1035
    %v1037 = vmul.f32 %v1030, 1.442695
    %v1038 = vpow.pop %v1037
    %v1039 = vadd.f32 %v1032, 1.0
    %v1040 = vadd.f32 %v1034, 1.0
    %v1041 = vadd.f32 %v1036, 1.0
    %v1042 = vadd.f32 %v1038, 1.0
    %v1043 = vrcp.pop %v1039
    %v1044 = vmul.f32 1.0, %v1043
    %v1045 = vrcp.pop %v1040
    %v1046 = vmul.f32 1.0, %v1045
    %v1047 = vrcp.pop %v1041
    %v1048 = vmul.f32 1.0, %v1047
    %v1049 = vrcp.pop %v1042
    %v1050 = vmul.f32 1.0, %v1049
    %v1051 = vmul.f32 %v1009, %v1044
    %v1052 = vmul.f32 %v1014, %v1046
    %v1053 = vmul.f32 %v1019, %v1048
    %v1054 = vmul.f32 %v1024, %v1050
    %s1055 = scalar_lea.vmem [#allocation2], 128
    %v1056 = vld [vmem:[%s1055] sm:$0xff]
    %v1057 = vld [vmem:[%s1055 + $0x8] sm:$0xff]
    %v1058 = vld [vmem:[%s1055 + $0x10] sm:$0xff]
    %v1059 = vld [vmem:[%s1055 + $0x18] sm:$0xff]
    %1060 = vset.pattern.permute.xlu0 5
    %1061 = vperm.xlu0 %1060, %v30
    %v1062 = vpop.permute.xlu0 %1061
    %1064 = vset.pattern.permute.xlu0 5
    %1065 = vperm.xlu0 %1064, %v31
    %v1066 = vpop.permute.xlu0 %1065
    %1068 = vset.pattern.permute.xlu0 5
    %1069 = vperm.xlu0 %1068, %v32
    %v1070 = vpop.permute.xlu0 %1069
    %1072 = vset.pattern.permute.xlu0 5
    %1073 = vperm.xlu0 %1072, %v33
    %v1074 = vpop.permute.xlu0 %1073
    %v1077 = vsel %vm637, %v1056, 0
    %v1080 = vsel %vm637, %v1057, 0
    %v1083 = vsel %vm637, %v1058, 0
    %v1086 = vsel %vm637, %v1059, 0
    %1088 = vmatprep.subr.mxu0 0.0
    %1089 = vmatpush1.msra.mxu0 %v1051
    %1090 = vmatprep.subr.mxu0 0.0
    %1091 = vmatpush1.msra.mxu0 %v1052
    %1092 = vmatprep.subr.mxu0 0.0
    %1093 = vmatpush1.msra.mxu0 %v1053
    %1094 = vmatprep.subr.mxu0 0.0
    %1095 = vmatpush1.msra.mxu0 %v1054
    %1096 = vmatprep.subr.mxu0 0.0
    %1097 = vmatpush1.msra.mxu0 0.0
    %1098 = vmatprep.subr.mxu0 0.0
    %1099 = vmatpush1.msra.mxu0 0.0
    %1100 = vmatprep.subr.mxu0 0.0
    %1101 = vmatpush1.msra.mxu0 0.0
    %1102 = vmatprep.subr.mxu0 0.0
    %1103 = vmatpush1.msra.mxu0 0.0
    %1104 = vmatprep.subr.mxu0 0.0
    %1105 = vmatpush1.msra.mxu0 0.0
    %1106 = vmatprep.subr.mxu0 0.0
    %1107 = vmatpush1.msra.mxu0 0.0
    %1108 = vmatprep.subr.mxu0 0.0
    %1109 = vmatpush1.msra.mxu0 0.0
    %1110 = vmatprep.subr.mxu0 0.0
    %1111 = vmatpush1.msra.mxu0 0.0
    %1112 = vmatprep.subr.mxu0 0.0
    %1113 = vmatpush1.msra.mxu0 0.0
    %1114 = vmatprep.subr.mxu0 0.0
    %1115 = vmatpush1.msra.mxu0 0.0
    %1116 = vmatprep.subr.mxu0 0.0
    %1117 = vmatpush1.msra.mxu0 0.0
    %1118 = vmatprep.subr.mxu0 0.0
    %1119 = vmatpush1.msra.mxu0 0.0
    %1120 = vmatprep.subr.mxu0 0.0
    %1121 = vmatpush1.msra.mxu0 0.0
    %1122 = vmatprep.subr.mxu0 0.0
    %1123 = vmatpush1.msra.mxu0 0.0
    %1124 = vmatprep.subr.mxu0 0.0
    %1125 = vmatpush1.msra.mxu0 0.0
    %1126 = vmatprep.subr.mxu0 0.0
    %1127 = vmatpush1.msra.mxu0 0.0
    %1128 = vmatprep.subr.mxu0 0.0
    %1129 = vmatpush1.msra.mxu0 0.0
    %1130 = vmatprep.subr.mxu0 0.0
    %1131 = vmatpush1.msra.mxu0 0.0
    %1132 = vmatprep.subr.mxu0 0.0
    %1133 = vmatpush1.msra.mxu0 0.0
    %1134 = vmatprep.subr.mxu0 0.0
    %1135 = vmatpush1.msra.mxu0 0.0
    %1136 = vmatprep.subr.mxu0 0.0
    %1137 = vmatpush1.msra.mxu0 0.0
    %1138 = vmatprep.subr.mxu0 0.0
    %1139 = vmatpush1.msra.mxu0 0.0
    %1140 = vmatprep.subr.mxu0 0.0
    %1141 = vmatpush1.msra.mxu0 0.0
    %1142 = vmatprep.subr.mxu0 0.0
    %1143 = vmatpush1.msra.mxu0 0.0
    %1144 = vmatprep.subr.mxu0 0.0
    %1145 = vmatpush1.msra.mxu0 0.0
    %1146 = vmatprep.subr.mxu0 0.0
    %1147 = vmatpush1.msra.mxu0 0.0
    %1148 = vmatprep.subr.mxu0 0.0
    %1149 = vmatpush1.msra.mxu0 0.0
    %1150 = vmatprep.subr.mxu0 0.0
    %1151 = vmatpush1.msra.mxu0 0.0
    %1152 = vmatprep.mubr.f32.mxu0 0.0
    %1153 = vmatmul.mubr.f32.gmra.mrb[0].mxu0 %v1077
    %v1154 = vpop.f32.mrb[0].mxu0
    %v1155 = vadd.f32 %v1062, %v1154
    %v1156 = vpop.f32.mrb[0].mxu0
    %1157 = vmatprep.mubr.f32.mxu0 0.0
    %1158 = vmatmul.mubr.f32.gmra.mrb[0].mxu0 %v1080
    %v1159 = vpop.f32.mrb[0].mxu0
    %v1160 = vadd.f32 %v1066, %v1159
    %v1161 = vpop.f32.mrb[0].mxu0
    %1162 = vmatprep.mubr.f32.mxu0 0.0
    %1163 = vmatmul.mubr.f32.gmra.mrb[0].mxu0 %v1083
    %v1164 = vpop.f32.mrb[0].mxu0
    %v1165 = vadd.f32 %v1070, %v1164
    %v1166 = vpop.f32.mrb[0].mxu0
    %1167 = vmatprep.mubr.f32.mxu0 0.0
    %1168 = vmatmul.mubr.f32.gmra.mrb[0].mxu0 %v1086
    %v1169 = vpop.f32.mrb[0].mxu0
    %v1170 = vadd.f32 %v1074, %v1169
    %v1171 = vpop.f32.mrb[0].mxu0
    %1172 = vdwg.mxu0
    %v1173 = vxor.u32 %v1155, 2147483648
    %v1174 = vxor.u32 %v1160, 2147483648
    %v1175 = vxor.u32 %v1165, 2147483648
    %v1176 = vxor.u32 %v1170, 2147483648
    %v1177 = vmul.f32 %v1173, 1.442695
    %v1178 = vpow.pop %v1177
    %v1179 = vmul.f32 %v1174, 1.442695
    %v1180 = vpow.pop %v1179
    %v1181 = vmul.f32 %v1175, 1.442695
    %v1182 = vpow.pop %v1181
    %v1183 = vmul.f32 %v1176, 1.442695
    %v1184 = vpow.pop %v1183
    %v1185 = vadd.f32 %v1178, 1.0
    %v1186 = vadd.f32 %v1180, 1.0
    %v1187 = vadd.f32 %v1182, 1.0
    %v1188 = vadd.f32 %v1184, 1.0
    %v1189 = vrcp.pop %v1185
    %v1190 = vmul.f32 1.0, %v1189
    %v1191 = vrcp.pop %v1186
    %v1192 = vmul.f32 1.0, %v1191
    %v1193 = vrcp.pop %v1187
    %v1194 = vmul.f32 1.0, %v1193
    %v1195 = vrcp.pop %v1188
    %v1196 = vmul.f32 1.0, %v1195
    %v1197 = vmul.f32 %v1155, %v1190
    %v1198 = vmul.f32 %v1160, %v1192
    %v1199 = vmul.f32 %v1165, %v1194
    %v1200 = vmul.f32 %v1170, %v1196
    %s1201 = scalar_lea.vmem [#allocation2], 160
    %v1202 = vld [vmem:[%s1201] sm:$0xff]
    %1203 = vset.pattern.permute.xlu0 6
    %1204 = vperm.xlu0 %1203, %v30
    %v1205 = vpop.permute.xlu0 %1204
    %v1208 = vsel %vm637, %v1202, 0
    %1210 = vmatprep.subr.mxu0 0.0
    %1211 = vmatpush1.msra.mxu0 %v1197
    %1212 = vmatprep.subr.mxu0 0.0
    %1213 = vmatpush1.msra.mxu0 %v1198
    %1214 = vmatprep.subr.mxu0 0.0
    %1215 = vmatpush1.msra.mxu0 %v1199
    %1216 = vmatprep.subr.mxu0 0.0
    %1217 = vmatpush1.msra.mxu0 %v1200
    %1218 = vmatprep.subr.mxu0 0.0
    %1219 = vmatpush1.msra.mxu0 0.0
    %1220 = vmatprep.subr.mxu0 0.0
    %1221 = vmatpush1.msra.mxu0 0.0
    %1222 = vmatprep.subr.mxu0 0.0
    %1223 = vmatpush1.msra.mxu0 0.0
    %1224 = vmatprep.subr.mxu0 0.0
    %1225 = vmatpush1.msra.mxu0 0.0
    %1226 = vmatprep.subr.mxu0 0.0
    %1227 = vmatpush1.msra.mxu0 0.0
    %1228 = vmatprep.subr.mxu0 0.0
    %1229 = vmatpush1.msra.mxu0 0.0
    %1230 = vmatprep.subr.mxu0 0.0
    %1231 = vmatpush1.msra.mxu0 0.0
    %1232 = vmatprep.subr.mxu0 0.0
    %1233 = vmatpush1.msra.mxu0 0.0
    %1234 = vmatprep.subr.mxu0 0.0
    %1235 = vmatpush1.msra.mxu0 0.0
    %1236 = vmatprep.subr.mxu0 0.0
    %1237 = vmatpush1.msra.mxu0 0.0
    %1238 = vmatprep.subr.mxu0 0.0
    %1239 = vmatpush1.msra.mxu0 0.0
    %1240 = vmatprep.subr.mxu0 0.0
    %1241 = vmatpush1.msra.mxu0 0.0
    %1242 = vmatprep.subr.mxu0 0.0
    %1243 = vmatpush1.msra.mxu0 0.0
    %1244 = vmatprep.subr.mxu0 0.0
    %1245 = vmatpush1.msra.mxu0 0.0
    %1246 = vmatprep.subr.mxu0 0.0
    %1247 = vmatpush1.msra.mxu0 0.0
    %1248 = vmatprep.subr.mxu0 0.0
    %1249 = vmatpush1.msra.mxu0 0.0
    %1250 = vmatprep.subr.mxu0 0.0
    %1251 = vmatpush1.msra.mxu0 0.0
    %1252 = vmatprep.subr.mxu0 0.0
    %1253 = vmatpush1.msra.mxu0 0.0
    %1254 = vmatprep.subr.mxu0 0.0
    %1255 = vmatpush1.msra.mxu0 0.0
    %1256 = vmatprep.subr.mxu0 0.0
    %1257 = vmatpush1.msra.mxu0 0.0
    %1258 = vmatprep.subr.mxu0 0.0
    %1259 = vmatpush1.msra.mxu0 0.0
    %1260 = vmatprep.subr.mxu0 0.0
    %1261 = vmatpush1.msra.mxu0 0.0
    %1262 = vmatprep.subr.mxu0 0.0
    %1263 = vmatpush1.msra.mxu0 0.0
    %1264 = vmatprep.subr.mxu0 0.0
    %1265 = vmatpush1.msra.mxu0 0.0
    %1266 = vmatprep.subr.mxu0 0.0
    %1267 = vmatpush1.msra.mxu0 0.0
    %1268 = vmatprep.subr.mxu0 0.0
    %1269 = vmatpush1.msra.mxu0 0.0
    %1270 = vmatprep.subr.mxu0 0.0
    %1271 = vmatpush1.msra.mxu0 0.0
    %1272 = vmatprep.subr.mxu0 0.0
    %1273 = vmatpush1.msra.mxu0 0.0
    %1274 = vmatprep.mubr.f32.mxu0 0.0
    %1275 = vmatmul.mubr.f32.gmra.mrb[0].mxu0 %v1208
    %v1276 = vpop.f32.mrb[0].mxu0
    %v1277 = vadd.f32 %v1205, %v1276
    %v1278 = vpop.f32.mrb[0].mxu0
    %1279 = vdwg.mxu0
    %1280 = vst [vmem:[#allocation5] sm:$0xf] %v1277
    // Predicated region
    $region18: #{tpu_custom_call.1} parent=1 // pred_check
      _
    $region19: #{tpu_custom_call.1} parent=1 // pred_check_branch
      %1282 = sbr.rel (0) target = $region21
    $region20: #{tpu_custom_call.1} parent=1 // pred_region
      %s1284 = ssub.s32 64, 64
      %1285 = vsyncadd [#allocation4], %s1284
      %s1287 = sshll.u32 [#allocation5], 4
      %s1288 = int_to_ptr.vmem [resolvable:$true] %s1287
      %1290 = dma.vmem_to_hbm [thread:$0]  %s1288, 64, %s3, [#allocation4]
    $region21: #{tpu_custom_call.1} parent=1 // pred_fallthru
      _
    // Predicated region
    $region22: #{tpu_custom_call.1} parent=1 // pred_check
      _
    $region23: #{tpu_custom_call.1} parent=1 // pred_check_branch
      %1292 = sbr.rel (0) target = $region25
    $region24: #{tpu_custom_call.1} parent=1 // pred_region
      %1293 = dma.done [#allocation4], 64
    $region25: #{tpu_custom_call.1} parent=1 // pred_fallthru
      _
    %1294 = vsyncpa [#allocation3], 1
    %1295 = vsyncpa [#allocation4], 1

</llo_original>
